<compile_context>
chip_gen: v7x
topology: tpu7x:2x2x1
jax: 0.10.0
libtpu: 0.0.40
codegen_flags: <defaults>
</compile_context>

<pallas_src>
import jax
import jax.numpy as jnp
from jax.experimental import pallas as pl
from jax.experimental.pallas import tpu as pltpu


_FRAME_IDX = 7                 # frame picked when long_exposure=False
_HW_TILE_TARGET = 16384        # lanes per grid step along H*W (multiple of 128)


def _mean_time_kernel(x_ref, o_ref):
    # x_ref: (R, T, HWt) input tile ; o_ref: (R, HWt) lane-dense output tile.
    # Per-frame accumulation into a single (R, HWt) f32 slab: no full-tile f32
    # temporary, cheap VPU adds (f32-native on v5e too), one multiply by 1/T.
    T = x_ref.shape[1]
    acc = x_ref[:, 0, :].astype(jnp.float32)
    for t in range(1, T):                      # static unroll, T is small
        acc = acc + x_ref[:, t, :].astype(jnp.float32)
    o_ref[...] = (acc * (1.0 / T)).astype(o_ref.dtype)


def _select_frame_kernel(x_ref, o_ref):
    # x_ref: (R, HWt) — only the selected frame was DMA'd (T dim squeezed).
    o_ref[...] = x_ref[...]


def _vmem_budget():
    """Generation-aware scoped-VMEM limit and per-step tile budget (bytes)."""
    cap = None
    try:
        cap = getattr(pltpu.get_tpu_info(), "vmem_capacity_bytes", None)
    except Exception:
        cap = None
    if not cap:
        cap = 64 * 1024 * 1024                 # conservative (v7x per-TC) fallback
    limit = max(16 * 1024 * 1024, min(int(cap * 0.75), 100 * 1024 * 1024))
    return limit, int(limit * 0.7)


def _pick_rows(BC, bytes_per_row, budget_bytes):
    """Rows of the B*C axis per grid step, chosen purely from the VMEM budget."""
    r = max(1, budget_bytes // max(1, bytes_per_row))
    if r >= BC:
        return BC                              # whole axis in one block
    # Partial block: keep the output block's sublane dim a multiple of 8.
    r = max(8, (r // 8) * 8)
    return min(r, BC)


def coded_baseline(x, long_exposure=True, frame_idx=_FRAME_IDX):
    """x: (B, C, T, H, W) -> (B, C, 1, H, W). Matches CodedBaseline.forward."""
    B, C, T, H, W = x.shape
    BC, HW = B * C, H * W
    x2 = x.reshape(BC, T, HW)
    itemsize = jnp.dtype(x.dtype).itemsize

    vmem_limit, tile_budget = _vmem_budget()

    # Second (parallel) grid axis over H*W: feeds both v7x TensorCores even
    # when B*C is tiny and bounds per-step tile size for large frames.
    hw_tile = HW if HW <= _HW_TILE_TARGET else _HW_TILE_TARGET

    if long_exposure:
        # double-buffered input + (R,HWt) f32 accumulator + double-buffered out
        bytes_per_row = (2 * T * hw_tile * itemsize
                         + hw_tile * 4
                         + 2 * hw_tile * itemsize)
    else:
        # single-frame input + output, both double-buffered
        bytes_per_row = (2 * hw_tile * itemsize
                         + 2 * hw_tile * itemsize)
    R = _pick_rows(BC, bytes_per_row, tile_budget)

    if long_exposure:
        kernel = _mean_time_kernel
        in_spec = pl.BlockSpec((R, T, hw_tile), lambda i, j: (i, 0, j))
    else:
        kernel = _select_frame_kernel
        # T dim squeezed at element `frame_idx`: only that frame is DMA'd and
        # the kernel sees a clean (R, HWt) tile (no size-1 sublane block dim).
        in_spec = pl.BlockSpec((R, pl.Squeezed(), hw_tile),
                               lambda i, j: (i, frame_idx, j))

    grid = (pl.cdiv(BC, R), pl.cdiv(HW, hw_tile))

    out = pl.pallas_call(
        kernel,
        out_shape=jax.ShapeDtypeStruct((BC, HW), x.dtype),
        grid_spec=pltpu.PrefetchScalarGridSpec(
            num_scalar_prefetch=0,
            grid=grid,
            in_specs=[in_spec],
            out_specs=pl.BlockSpec((R, hw_tile), lambda i, j: (i, j)),
        ),
        compiler_params=pltpu.CompilerParams(
            dimension_semantics=("parallel", "parallel"),
            vmem_limit_bytes=vmem_limit,
        ),
    )(x2)

    return out.reshape(B, C, 1, H, W)


def coded_baseline_get_pattern(long_exposure=True):
    # Mirrors CodedBaseline.get_pattern (plain JAX; no kernel needed).
    if long_exposure:
        return jnp.ones((1, 16, 8, 8), dtype=jnp.float32)
    z = jnp.zeros((1, 16, 8, 8), dtype=jnp.float32)
    return z.at[0, _FRAME_IDX, :, :].set(1.0)


if __name__ == "__main__":
    key = jax.random.PRNGKey(0)
    # Small video-shaped input consistent with the module: (B, C, T, H, W)
    B, C, T, H, W = 2, 4, 16, 8, 8
    x = jax.random.normal(key, (B, C, T, H, W), dtype=jnp.float32)

    # long_exposure=True branch (temporal mean)
    y_long = jax.block_until_ready(coded_baseline(x, long_exposure=True))
    ref_long = jnp.mean(x, axis=2, keepdims=True)
    assert y_long.shape == (B, C, 1, H, W)
    assert jnp.allclose(y_long, ref_long, atol=1e-5, rtol=1e-5)

    # long_exposure=False branch (frame-7 selection)
    y_short = jax.block_until_ready(coded_baseline(x, long_exposure=False))
    ref_short = x[:, :, 7:8, :, :]
    assert y_short.shape == (B, C, 1, H, W)
    assert jnp.allclose(y_short, ref_short)

    # bf16 input exercises the per-frame f32-accumulate path (no f32 temp).
    xb = x.astype(jnp.bfloat16)
    y_bf16 = jax.block_until_ready(coded_baseline(xb, long_exposure=True))
    ref_bf16 = jnp.mean(xb.astype(jnp.float32), axis=2, keepdims=True)
    assert y_bf16.shape == (B, C, 1, H, W)
    assert jnp.allclose(y_bf16.astype(jnp.float32), ref_bf16, atol=2e-2, rtol=2e-2)

    print("KERNEL_OK")
</pallas_src>

<mosaic_0001>
module attributes {stable_mosaic.version = 11 : i64} {
  func.func @_mean_time_kernel(%arg0: i32, %arg1: i32, %arg2: memref<8x16x64xf32, #tpu.memory_space<vmem>>, %arg3: memref<8x64xf32, #tpu.memory_space<vmem>>) attributes {dimension_semantics = [#tpu.dimension_semantics<parallel>, #tpu.dimension_semantics<parallel>], iteration_bounds = array<i64: 1, 1>, scalar_prefetch = 0 : i64, scratch_operands = 0 : i64, tpu.core_type = #tpu.core_type<tc>, window_params = [{transform_indices = @transform_0, window_bounds = array<i64: 8, 16, 64>}, {transform_indices = @transform_1, window_bounds = array<i64: 8, 64>}]} {
    %c0 = arith.constant 0 : index
    %c0_0 = arith.constant 0 : index
    %c0_1 = arith.constant 0 : index
    %0 = vector.load %arg2[%c0, %c0_0, %c0_1] : memref<8x16x64xf32, #tpu.memory_space<vmem>>, vector<8x1x64xf32>
    %1 = vector.shape_cast %0 : vector<8x1x64xf32> to vector<8x64xf32>
    %c0_2 = arith.constant 0 : index
    %c1 = arith.constant 1 : index
    %c0_3 = arith.constant 0 : index
    %2 = vector.load %arg2[%c0_2, %c1, %c0_3] : memref<8x16x64xf32, #tpu.memory_space<vmem>>, vector<8x1x64xf32>
    %3 = vector.shape_cast %2 : vector<8x1x64xf32> to vector<8x64xf32>
    %4 = arith.addf %1, %3 : vector<8x64xf32>
    %c0_4 = arith.constant 0 : index
    %c2 = arith.constant 2 : index
    %c0_5 = arith.constant 0 : index
    %5 = vector.load %arg2[%c0_4, %c2, %c0_5] : memref<8x16x64xf32, #tpu.memory_space<vmem>>, vector<8x1x64xf32>
    %6 = vector.shape_cast %5 : vector<8x1x64xf32> to vector<8x64xf32>
    %7 = arith.addf %4, %6 : vector<8x64xf32>
    %c0_6 = arith.constant 0 : index
    %c3 = arith.constant 3 : index
    %c0_7 = arith.constant 0 : index
    %8 = vector.load %arg2[%c0_6, %c3, %c0_7] : memref<8x16x64xf32, #tpu.memory_space<vmem>>, vector<8x1x64xf32>
    %9 = vector.shape_cast %8 : vector<8x1x64xf32> to vector<8x64xf32>
    %10 = arith.addf %7, %9 : vector<8x64xf32>
    %c0_8 = arith.constant 0 : index
    %c4 = arith.constant 4 : index
    %c0_9 = arith.constant 0 : index
    %11 = vector.load %arg2[%c0_8, %c4, %c0_9] : memref<8x16x64xf32, #tpu.memory_space<vmem>>, vector<8x1x64xf32>
    %12 = vector.shape_cast %11 : vector<8x1x64xf32> to vector<8x64xf32>
    %13 = arith.addf %10, %12 : vector<8x64xf32>
    %c0_10 = arith.constant 0 : index
    %c5 = arith.constant 5 : index
    %c0_11 = arith.constant 0 : index
    %14 = vector.load %arg2[%c0_10, %c5, %c0_11] : memref<8x16x64xf32, #tpu.memory_space<vmem>>, vector<8x1x64xf32>
    %15 = vector.shape_cast %14 : vector<8x1x64xf32> to vector<8x64xf32>
    %16 = arith.addf %13, %15 : vector<8x64xf32>
    %c0_12 = arith.constant 0 : index
    %c6 = arith.constant 6 : index
    %c0_13 = arith.constant 0 : index
    %17 = vector.load %arg2[%c0_12, %c6, %c0_13] : memref<8x16x64xf32, #tpu.memory_space<vmem>>, vector<8x1x64xf32>
    %18 = vector.shape_cast %17 : vector<8x1x64xf32> to vector<8x64xf32>
    %19 = arith.addf %16, %18 : vector<8x64xf32>
    %c0_14 = arith.constant 0 : index
    %c7 = arith.constant 7 : index
    %c0_15 = arith.constant 0 : index
    %20 = vector.load %arg2[%c0_14, %c7, %c0_15] : memref<8x16x64xf32, #tpu.memory_space<vmem>>, vector<8x1x64xf32>
    %21 = vector.shape_cast %20 : vector<8x1x64xf32> to vector<8x64xf32>
    %22 = arith.addf %19, %21 : vector<8x64xf32>
    %c0_16 = arith.constant 0 : index
    %c8 = arith.constant 8 : index
    %c0_17 = arith.constant 0 : index
    %23 = vector.load %arg2[%c0_16, %c8, %c0_17] : memref<8x16x64xf32, #tpu.memory_space<vmem>>, vector<8x1x64xf32>
    %24 = vector.shape_cast %23 : vector<8x1x64xf32> to vector<8x64xf32>
    %25 = arith.addf %22, %24 : vector<8x64xf32>
    %c0_18 = arith.constant 0 : index
    %c9 = arith.constant 9 : index
    %c0_19 = arith.constant 0 : index
    %26 = vector.load %arg2[%c0_18, %c9, %c0_19] : memref<8x16x64xf32, #tpu.memory_space<vmem>>, vector<8x1x64xf32>
    %27 = vector.shape_cast %26 : vector<8x1x64xf32> to vector<8x64xf32>
    %28 = arith.addf %25, %27 : vector<8x64xf32>
    %c0_20 = arith.constant 0 : index
    %c10 = arith.constant 10 : index
    %c0_21 = arith.constant 0 : index
    %29 = vector.load %arg2[%c0_20, %c10, %c0_21] : memref<8x16x64xf32, #tpu.memory_space<vmem>>, vector<8x1x64xf32>
    %30 = vector.shape_cast %29 : vector<8x1x64xf32> to vector<8x64xf32>
    %31 = arith.addf %28, %30 : vector<8x64xf32>
    %c0_22 = arith.constant 0 : index
    %c11 = arith.constant 11 : index
    %c0_23 = arith.constant 0 : index
    %32 = vector.load %arg2[%c0_22, %c11, %c0_23] : memref<8x16x64xf32, #tpu.memory_space<vmem>>, vector<8x1x64xf32>
    %33 = vector.shape_cast %32 : vector<8x1x64xf32> to vector<8x64xf32>
    %34 = arith.addf %31, %33 : vector<8x64xf32>
    %c0_24 = arith.constant 0 : index
    %c12 = arith.constant 12 : index
    %c0_25 = arith.constant 0 : index
    %35 = vector.load %arg2[%c0_24, %c12, %c0_25] : memref<8x16x64xf32, #tpu.memory_space<vmem>>, vector<8x1x64xf32>
    %36 = vector.shape_cast %35 : vector<8x1x64xf32> to vector<8x64xf32>
    %37 = arith.addf %34, %36 : vector<8x64xf32>
    %c0_26 = arith.constant 0 : index
    %c13 = arith.constant 13 : index
    %c0_27 = arith.constant 0 : index
    %38 = vector.load %arg2[%c0_26, %c13, %c0_27] : memref<8x16x64xf32, #tpu.memory_space<vmem>>, vector<8x1x64xf32>
    %39 = vector.shape_cast %38 : vector<8x1x64xf32> to vector<8x64xf32>
    %40 = arith.addf %37, %39 : vector<8x64xf32>
    %c0_28 = arith.constant 0 : index
    %c14 = arith.constant 14 : index
    %c0_29 = arith.constant 0 : index
    %41 = vector.load %arg2[%c0_28, %c14, %c0_29] : memref<8x16x64xf32, #tpu.memory_space<vmem>>, vector<8x1x64xf32>
    %42 = vector.shape_cast %41 : vector<8x1x64xf32> to vector<8x64xf32>
    %43 = arith.addf %40, %42 : vector<8x64xf32>
    %c0_30 = arith.constant 0 : index
    %c15 = arith.constant 15 : index
    %c0_31 = arith.constant 0 : index
    %44 = vector.load %arg2[%c0_30, %c15, %c0_31] : memref<8x16x64xf32, #tpu.memory_space<vmem>>, vector<8x1x64xf32>
    %45 = vector.shape_cast %44 : vector<8x1x64xf32> to vector<8x64xf32>
    %46 = arith.addf %43, %45 : vector<8x64xf32>
    %cst = arith.constant 6.250000e-02 : f32
    %47 = vector.broadcast %cst : f32 to vector<8x64xf32>
    %48 = arith.mulf %46, %47 : vector<8x64xf32>
    %c0_32 = arith.constant 0 : index
    %c0_33 = arith.constant 0 : index
    %49 = vector.load %arg3[%c0_32, %c0_33] : memref<8x64xf32, #tpu.memory_space<vmem>>, vector<8x64xf32>
    tpu.vector_store %arg3[%c0_32, %c0_33], %48 {strides = array<i32>} : memref<8x64xf32, #tpu.memory_space<vmem>>, vector<8x64xf32>,
    return
  }
  func.func @transform_0(%arg0: i32, %arg1: i32) -> (i32, i32, i32) {
    %c0_i32 = arith.constant 0 : i32
    %c0_i32_0 = arith.constant 0 : i32
    return %arg0, %c0_i32, %arg1 : i32, i32, i32
  }
  func.func @transform_1(%arg0: i32, %arg1: i32) -> (i32, i32) {
    %c0_i32 = arith.constant 0 : i32
    return %arg0, %arg1 : i32, i32
  }
}

</mosaic_0001>

<llo_original>
// kernel: tpu_custom_call.1
$region0: #{tpu_custom_call.1}
  #allocation0 [shape = 'u32[]', space=smem, size = 0x4, offset = 0x4, fixed_abs, tag = 'smem constant byte address 0x4 - core index']
  #allocation1 [shape = 'u32[144,128]{1,0:T(1,128)}', space=vmem, size = 0x12000, scoped, tag = 'internal scratch']
  %s0 = inlined_call_operand.hbm [shape: f32[8,16,64], index: 0, kind: input, shape index: {}]
  %s1 = inlined_call_operand.hbm [shape: f32[8,64], index: 1, kind: output, shape index: {}]
  %s2 = sld [smem:[#allocation0]]
  $region18: #{tpu_custom_call.1} parent=0
    _
  %s4 = ssub.s32 1, %s2
  %s5 = scalar_select 0, %s4, %s2
  $region1: #{tpu_custom_call.1} parent=0
    #allocation2 [shape = 'u8[65536]{0}', space=vmem, size = 0x10000, scoped, tag = 'input window, operand 0, single buffered']
    #allocation3 [shape = 's32[1]{0}', space=sflag, size = 0x4, scoped, tag = 'scoped memory for tpu_custom_call.1']
    #allocation4 [shape = 's32[1]{0}', space=sflag, size = 0x4, scoped, tag = 'scoped memory for tpu_custom_call.1']
    #allocation5 [shape = 'u8[4096]{0}', space=vmem, size = 0x1000, scoped, tag = 'output window, operand 0, single buffered']
    %6 = vsyncpa [#allocation3], 0
    %7 = vsyncpa [#allocation4], 0
    // Predicated region
    $region2: #{tpu_custom_call.1} parent=1 // pred_check
      _
    $region3: #{tpu_custom_call.1} parent=1 // pred_check_branch
      %9 = sbr.rel (0) target = $region5
    $region4: #{tpu_custom_call.1} parent=1 // pred_region
      %s11 = ssub.s32 2048, 2048
      %12 = vsyncadd [#allocation3], %s11
      %s13 = sshll.u32 [#allocation2], 4
      %s14 = int_to_ptr.vmem [resolvable:$true] %s13
      %19 = dma.hbm_to_vmem [thread:$0]  %s0, 2048, %s14, [#allocation3], 128, 128, 8
    $region5: #{tpu_custom_call.1} parent=1 // pred_fallthru
      _
    // Predicated region
    $region6: #{tpu_custom_call.1} parent=1 // pred_check
      _
    $region7: #{tpu_custom_call.1} parent=1 // pred_check_branch
      %21 = sbr.rel (0) target = $region9
    $region8: #{tpu_custom_call.1} parent=1 // pred_region
      %22 = dma.done [#allocation3], 2048
    $region9: #{tpu_custom_call.1} parent=1 // pred_fallthru
      _
    %v23 = vld [vmem:[#allocation2] sm:$0x1]
    %v24 = vld [vmem:[#allocation2 + $0x10] sm:$0x1]
    %v25 = vld [vmem:[#allocation2 + $0x20] sm:$0x1]
    %v26 = vld [vmem:[#allocation2 + $0x30] sm:$0x1]
    %v27 = vld [vmem:[#allocation2 + $0x40] sm:$0x1]
    %v28 = vld [vmem:[#allocation2 + $0x50] sm:$0x1]
    %v29 = vld [vmem:[#allocation2 + $0x60] sm:$0x1]
    %v30 = vld [vmem:[#allocation2 + $0x70] sm:$0x1]
    %v31 = vld [vmem:[#allocation2 + $0x1] sm:$0x1]
    %v32 = vld [vmem:[#allocation2 + $0x11] sm:$0x1]
    %v33 = vld [vmem:[#allocation2 + $0x21] sm:$0x1]
    %v34 = vld [vmem:[#allocation2 + $0x31] sm:$0x1]
    %v35 = vld [vmem:[#allocation2 + $0x41] sm:$0x1]
    %v36 = vld [vmem:[#allocation2 + $0x51] sm:$0x1]
    %v37 = vld [vmem:[#allocation2 + $0x61] sm:$0x1]
    %v38 = vld [vmem:[#allocation2 + $0x71] sm:$0x1]
    %v39 = vadd.f32 %v23, %v31
    %v40 = vadd.f32 %v24, %v32
    %v41 = vadd.f32 %v25, %v33
    %v42 = vadd.f32 %v26, %v34
    %v43 = vadd.f32 %v27, %v35
    %v44 = vadd.f32 %v28, %v36
    %v45 = vadd.f32 %v29, %v37
    %v46 = vadd.f32 %v30, %v38
    %v47 = vld [vmem:[#allocation2 + $0x2] sm:$0x1]
    %v48 = vld [vmem:[#allocation2 + $0x12] sm:$0x1]
    %v49 = vld [vmem:[#allocation2 + $0x22] sm:$0x1]
    %v50 = vld [vmem:[#allocation2 + $0x32] sm:$0x1]
    %v51 = vld [vmem:[#allocation2 + $0x42] sm:$0x1]
    %v52 = vld [vmem:[#allocation2 + $0x52] sm:$0x1]
    %v53 = vld [vmem:[#allocation2 + $0x62] sm:$0x1]
    %v54 = vld [vmem:[#allocation2 + $0x72] sm:$0x1]
    %v55 = vadd.f32 %v39, %v47
    %v56 = vadd.f32 %v40, %v48
    %v57 = vadd.f32 %v41, %v49
    %v58 = vadd.f32 %v42, %v50
    %v59 = vadd.f32 %v43, %v51
    %v60 = vadd.f32 %v44, %v52
    %v61 = vadd.f32 %v45, %v53
    %v62 = vadd.f32 %v46, %v54
    %v63 = vld [vmem:[#allocation2 + $0x3] sm:$0x1]
    %v64 = vld [vmem:[#allocation2 + $0x13] sm:$0x1]
    %v65 = vld [vmem:[#allocation2 + $0x23] sm:$0x1]
    %v66 = vld [vmem:[#allocation2 + $0x33] sm:$0x1]
    %v67 = vld [vmem:[#allocation2 + $0x43] sm:$0x1]
    %v68 = vld [vmem:[#allocation2 + $0x53] sm:$0x1]
    %v69 = vld [vmem:[#allocation2 + $0x63] sm:$0x1]
    %v70 = vld [vmem:[#allocation2 + $0x73] sm:$0x1]
    %v71 = vadd.f32 %v55, %v63
    %v72 = vadd.f32 %v56, %v64
    %v73 = vadd.f32 %v57, %v65
    %v74 = vadd.f32 %v58, %v66
    %v75 = vadd.f32 %v59, %v67
    %v76 = vadd.f32 %v60, %v68
    %v77 = vadd.f32 %v61, %v69
    %v78 = vadd.f32 %v62, %v70
    %v79 = vld [vmem:[#allocation2 + $0x4] sm:$0x1]
    %v80 = vld [vmem:[#allocation2 + $0x14] sm:$0x1]
    %v81 = vld [vmem:[#allocation2 + $0x24] sm:$0x1]
    %v82 = vld [vmem:[#allocation2 + $0x34] sm:$0x1]
    %v83 = vld [vmem:[#allocation2 + $0x44] sm:$0x1]
    %v84 = vld [vmem:[#allocation2 + $0x54] sm:$0x1]
    %v85 = vld [vmem:[#allocation2 + $0x64] sm:$0x1]
    %v86 = vld [vmem:[#allocation2 + $0x74] sm:$0x1]
    %v87 = vadd.f32 %v71, %v79
    %v88 = vadd.f32 %v72, %v80
    %v89 = vadd.f32 %v73, %v81
    %v90 = vadd.f32 %v74, %v82
    %v91 = vadd.f32 %v75, %v83
    %v92 = vadd.f32 %v76, %v84
    %v93 = vadd.f32 %v77, %v85
    %v94 = vadd.f32 %v78, %v86
    %v95 = vld [vmem:[#allocation2 + $0x5] sm:$0x1]
    %v96 = vld [vmem:[#allocation2 + $0x15] sm:$0x1]
    %v97 = vld [vmem:[#allocation2 + $0x25] sm:$0x1]
    %v98 = vld [vmem:[#allocation2 + $0x35] sm:$0x1]
    %v99 = vld [vmem:[#allocation2 + $0x45] sm:$0x1]
    %v100 = vld [vmem:[#allocation2 + $0x55] sm:$0x1]
    %v101 = vld [vmem:[#allocation2 + $0x65] sm:$0x1]
    %v102 = vld [vmem:[#allocation2 + $0x75] sm:$0x1]
    %v103 = vadd.f32 %v87, %v95
    %v104 = vadd.f32 %v88, %v96
    %v105 = vadd.f32 %v89, %v97
    %v106 = vadd.f32 %v90, %v98
    %v107 = vadd.f32 %v91, %v99
    %v108 = vadd.f32 %v92, %v100
    %v109 = vadd.f32 %v93, %v101
    %v110 = vadd.f32 %v94, %v102
    %v111 = vld [vmem:[#allocation2 + $0x6] sm:$0x1]
    %v112 = vld [vmem:[#allocation2 + $0x16] sm:$0x1]
    %v113 = vld [vmem:[#allocation2 + $0x26] sm:$0x1]
    %v114 = vld [vmem:[#allocation2 + $0x36] sm:$0x1]
    %v115 = vld [vmem:[#allocation2 + $0x46] sm:$0x1]
    %v116 = vld [vmem:[#allocation2 + $0x56] sm:$0x1]
    %v117 = vld [vmem:[#allocation2 + $0x66] sm:$0x1]
    %v118 = vld [vmem:[#allocation2 + $0x76] sm:$0x1]
    %v119 = vadd.f32 %v103, %v111
    %v120 = vadd.f32 %v104, %v112
    %v121 = vadd.f32 %v105, %v113
    %v122 = vadd.f32 %v106, %v114
    %v123 = vadd.f32 %v107, %v115
    %v124 = vadd.f32 %v108, %v116
    %v125 = vadd.f32 %v109, %v117
    %v126 = vadd.f32 %v110, %v118
    %v127 = vld [vmem:[#allocation2 + $0x7] sm:$0x1]
    %v128 = vld [vmem:[#allocation2 + $0x17] sm:$0x1]
    %v129 = vld [vmem:[#allocation2 + $0x27] sm:$0x1]
    %v130 = vld [vmem:[#allocation2 + $0x37] sm:$0x1]
    %v131 = vld [vmem:[#allocation2 + $0x47] sm:$0x1]
    %v132 = vld [vmem:[#allocation2 + $0x57] sm:$0x1]
    %v133 = vld [vmem:[#allocation2 + $0x67] sm:$0x1]
    %v134 = vld [vmem:[#allocation2 + $0x77] sm:$0x1]
    %v135 = vadd.f32 %v119, %v127
    %v136 = vadd.f32 %v120, %v128
    %v137 = vadd.f32 %v121, %v129
    %v138 = vadd.f32 %v122, %v130
    %v139 = vadd.f32 %v123, %v131
    %v140 = vadd.f32 %v124, %v132
    %v141 = vadd.f32 %v125, %v133
    %v142 = vadd.f32 %v126, %v134
    %v143 = vld [vmem:[#allocation2 + $0x8] sm:$0x1]
    %v144 = vld [vmem:[#allocation2 + $0x18] sm:$0x1]
    %v145 = vld [vmem:[#allocation2 + $0x28] sm:$0x1]
    %v146 = vld [vmem:[#allocation2 + $0x38] sm:$0x1]
    %v147 = vld [vmem:[#allocation2 + $0x48] sm:$0x1]
    %v148 = vld [vmem:[#allocation2 + $0x58] sm:$0x1]
    %v149 = vld [vmem:[#allocation2 + $0x68] sm:$0x1]
    %v150 = vld [vmem:[#allocation2 + $0x78] sm:$0x1]
    %v151 = vadd.f32 %v135, %v143
    %v152 = vadd.f32 %v136, %v144
    %v153 = vadd.f32 %v137, %v145
    %v154 = vadd.f32 %v138, %v146
    %v155 = vadd.f32 %v139, %v147
    %v156 = vadd.f32 %v140, %v148
    %v157 = vadd.f32 %v141, %v149
    %v158 = vadd.f32 %v142, %v150
    %v159 = vld [vmem:[#allocation2 + $0x9] sm:$0x1]
    %v160 = vld [vmem:[#allocation2 + $0x19] sm:$0x1]
    %v161 = vld [vmem:[#allocation2 + $0x29] sm:$0x1]
    %v162 = vld [vmem:[#allocation2 + $0x39] sm:$0x1]
    %v163 = vld [vmem:[#allocation2 + $0x49] sm:$0x1]
    %v164 = vld [vmem:[#allocation2 + $0x59] sm:$0x1]
    %v165 = vld [vmem:[#allocation2 + $0x69] sm:$0x1]
    %v166 = vld [vmem:[#allocation2 + $0x79] sm:$0x1]
    %v167 = vadd.f32 %v151, %v159
    %v168 = vadd.f32 %v152, %v160
    %v169 = vadd.f32 %v153, %v161
    %v170 = vadd.f32 %v154, %v162
    %v171 = vadd.f32 %v155, %v163
    %v172 = vadd.f32 %v156, %v164
    %v173 = vadd.f32 %v157, %v165
    %v174 = vadd.f32 %v158, %v166
    %v175 = vld [vmem:[#allocation2 + $0xa] sm:$0x1]
    %v176 = vld [vmem:[#allocation2 + $0x1a] sm:$0x1]
    %v177 = vld [vmem:[#allocation2 + $0x2a] sm:$0x1]
    %v178 = vld [vmem:[#allocation2 + $0x3a] sm:$0x1]
    %v179 = vld [vmem:[#allocation2 + $0x4a] sm:$0x1]
    %v180 = vld [vmem:[#allocation2 + $0x5a] sm:$0x1]
    %v181 = vld [vmem:[#allocation2 + $0x6a] sm:$0x1]
    %v182 = vld [vmem:[#allocation2 + $0x7a] sm:$0x1]
    %v183 = vadd.f32 %v167, %v175
    %v184 = vadd.f32 %v168, %v176
    %v185 = vadd.f32 %v169, %v177
    %v186 = vadd.f32 %v170, %v178
    %v187 = vadd.f32 %v171, %v179
    %v188 = vadd.f32 %v172, %v180
    %v189 = vadd.f32 %v173, %v181
    %v190 = vadd.f32 %v174, %v182
    %v191 = vld [vmem:[#allocation2 + $0xb] sm:$0x1]
    %v192 = vld [vmem:[#allocation2 + $0x1b] sm:$0x1]
    %v193 = vld [vmem:[#allocation2 + $0x2b] sm:$0x1]
    %v194 = vld [vmem:[#allocation2 + $0x3b] sm:$0x1]
    %v195 = vld [vmem:[#allocation2 + $0x4b] sm:$0x1]
    %v196 = vld [vmem:[#allocation2 + $0x5b] sm:$0x1]
    %v197 = vld [vmem:[#allocation2 + $0x6b] sm:$0x1]
    %v198 = vld [vmem:[#allocation2 + $0x7b] sm:$0x1]
    %v199 = vadd.f32 %v183, %v191
    %v200 = vadd.f32 %v184, %v192
    %v201 = vadd.f32 %v185, %v193
    %v202 = vadd.f32 %v186, %v194
    %v203 = vadd.f32 %v187, %v195
    %v204 = vadd.f32 %v188, %v196
    %v205 = vadd.f32 %v189, %v197
    %v206 = vadd.f32 %v190, %v198
    %v207 = vld [vmem:[#allocation2 + $0xc] sm:$0x1]
    %v208 = vld [vmem:[#allocation2 + $0x1c] sm:$0x1]
    %v209 = vld [vmem:[#allocation2 + $0x2c] sm:$0x1]
    %v210 = vld [vmem:[#allocation2 + $0x3c] sm:$0x1]
    %v211 = vld [vmem:[#allocation2 + $0x4c] sm:$0x1]
    %v212 = vld [vmem:[#allocation2 + $0x5c] sm:$0x1]
    %v213 = vld [vmem:[#allocation2 + $0x6c] sm:$0x1]
    %v214 = vld [vmem:[#allocation2 + $0x7c] sm:$0x1]
    %v215 = vadd.f32 %v199, %v207
    %v216 = vadd.f32 %v200, %v208
    %v217 = vadd.f32 %v201, %v209
    %v218 = vadd.f32 %v202, %v210
    %v219 = vadd.f32 %v203, %v211
    %v220 = vadd.f32 %v204, %v212
    %v221 = vadd.f32 %v205, %v213
    %v222 = vadd.f32 %v206, %v214
    %v223 = vld [vmem:[#allocation2 + $0xd] sm:$0x1]
    %v224 = vld [vmem:[#allocation2 + $0x1d] sm:$0x1]
    %v225 = vld [vmem:[#allocation2 + $0x2d] sm:$0x1]
    %v226 = vld [vmem:[#allocation2 + $0x3d] sm:$0x1]
    %v227 = vld [vmem:[#allocation2 + $0x4d] sm:$0x1]
    %v228 = vld [vmem:[#allocation2 + $0x5d] sm:$0x1]
    %v229 = vld [vmem:[#allocation2 + $0x6d] sm:$0x1]
    %v230 = vld [vmem:[#allocation2 + $0x7d] sm:$0x1]
    %v231 = vadd.f32 %v215, %v223
    %v232 = vadd.f32 %v216, %v224
    %v233 = vadd.f32 %v217, %v225
    %v234 = vadd.f32 %v218, %v226
    %v235 = vadd.f32 %v219, %v227
    %v236 = vadd.f32 %v220, %v228
    %v237 = vadd.f32 %v221, %v229
    %v238 = vadd.f32 %v222, %v230
    %v239 = vld [vmem:[#allocation2 + $0xe] sm:$0x1]
    %v240 = vld [vmem:[#allocation2 + $0x1e] sm:$0x1]
    %v241 = vld [vmem:[#allocation2 + $0x2e] sm:$0x1]
    %v242 = vld [vmem:[#allocation2 + $0x3e] sm:$0x1]
    %v243 = vld [vmem:[#allocation2 + $0x4e] sm:$0x1]
    %v244 = vld [vmem:[#allocation2 + $0x5e] sm:$0x1]
    %v245 = vld [vmem:[#allocation2 + $0x6e] sm:$0x1]
    %v246 = vld [vmem:[#allocation2 + $0x7e] sm:$0x1]
    %v247 = vadd.f32 %v231, %v239
    %v248 = vadd.f32 %v232, %v240
    %v249 = vadd.f32 %v233, %v241
    %v250 = vadd.f32 %v234, %v242
    %v251 = vadd.f32 %v235, %v243
    %v252 = vadd.f32 %v236, %v244
    %v253 = vadd.f32 %v237, %v245
    %v254 = vadd.f32 %v238, %v246
    %v255 = vld [vmem:[#allocation2 + $0xf] sm:$0x1]
    %v256 = vld [vmem:[#allocation2 + $0x1f] sm:$0x1]
    %v257 = vld [vmem:[#allocation2 + $0x2f] sm:$0x1]
    %v258 = vld [vmem:[#allocation2 + $0x3f] sm:$0x1]
    %v259 = vld [vmem:[#allocation2 + $0x4f] sm:$0x1]
    %v260 = vld [vmem:[#allocation2 + $0x5f] sm:$0x1]
    %v261 = vld [vmem:[#allocation2 + $0x6f] sm:$0x1]
    %v262 = vld [vmem:[#allocation2 + $0x7f] sm:$0x1]
    %v263 = vadd.f32 %v247, %v255
    %v264 = vadd.f32 %v248, %v256
    %v265 = vadd.f32 %v249, %v257
    %v266 = vadd.f32 %v250, %v258
    %v267 = vadd.f32 %v251, %v259
    %v268 = vadd.f32 %v252, %v260
    %v269 = vadd.f32 %v253, %v261
    %v270 = vadd.f32 %v254, %v262
    %v271 = vmul.f32 %v263, 0.0625
    %v272 = vmul.f32 %v264, 0.0625
    %v273 = vmul.f32 %v265, 0.0625
    %v274 = vmul.f32 %v266, 0.0625
    %v275 = vmul.f32 %v267, 0.0625
    %v276 = vmul.f32 %v268, 0.0625
    %v277 = vmul.f32 %v269, 0.0625
    %v278 = vmul.f32 %v270, 0.0625
    %v287 = vrot.slane %v272, 7
    %vm288 = vcmask 1041409
    %v289 = vsel %vm288, %v287, %v271
    %v290 = vrot.slane %v273, 6
    %vm291 = vcmask 1042434
    %v292 = vsel %vm291, %v290, %v289
    %v293 = vrot.slane %v274, 5
    %vm294 = vcmask 1043459
    %v295 = vsel %vm294, %v293, %v292
    %v296 = vrot.slane %v275, 4
    %vm297 = vcmask 1044484
    %v298 = vsel %vm297, %v296, %v295
    %v299 = vrot.slane %v276, 3
    %vm300 = vcmask 1045509
    %v301 = vsel %vm300, %v299, %v298
    %v302 = vrot.slane %v277, 2
    %vm303 = vcmask 1046534
    %v304 = vsel %vm303, %v302, %v301
    %v305 = vrot.slane %v278, 1
    %vm306 = vcmask 1047559
    %v307 = vsel %vm306, %v305, %v304
    %vm309 = vcmask 523264
    %310 = vst.msk [vmem:[#allocation5] sm:$0xff] %vm309, %v307
    // Predicated region
    $region10: #{tpu_custom_call.1} parent=1 // pred_check
      _
    $region11: #{tpu_custom_call.1} parent=1 // pred_check_branch
      %312 = sbr.rel (0) target = $region13
    $region12: #{tpu_custom_call.1} parent=1 // pred_region
      %s314 = ssub.s32 128, 128
      %315 = vsyncadd [#allocation4], %s314
      %s317 = sshll.u32 [#allocation5], 4
      %s318 = int_to_ptr.vmem [resolvable:$true] %s317
      %320 = dma.vmem_to_hbm [thread:$0]  %s318, 128, %s1, [#allocation4]
    $region13: #{tpu_custom_call.1} parent=1 // pred_fallthru
      _
    // Predicated region
    $region14: #{tpu_custom_call.1} parent=1 // pred_check
      _
    $region15: #{tpu_custom_call.1} parent=1 // pred_check_branch
      %322 = sbr.rel (0) target = $region17
    $region16: #{tpu_custom_call.1} parent=1 // pred_region
      %323 = dma.done [#allocation4], 128
    $region17: #{tpu_custom_call.1} parent=1 // pred_fallthru
      _
    %324 = vsyncpa [#allocation3], 1
    %325 = vsyncpa [#allocation4], 1

</llo_original>
